<compile_context>
chip_gen: v6e
topology: v6e:2x2x1
jax: 0.10.0
libtpu: 0.0.40
codegen_flags: <defaults>
</compile_context>

<pallas_src>
import jax
import jax.numpy as jnp
from jax.experimental import pallas as pl
from jax.experimental.pallas import tpu as pltpu

BN_EPS = 1e-5       # nn.BatchNorm1d default
_MAX_NB = 16        # max batch elements per block (static in-kernel unroll)


def _reslayer_kernel(x_ref, w_ref, p_ref, o_ref):
    """One (batch-block, L-tile) step of the ResLayer forward.

    x_ref: (NB, C, TL)  input tile (NCL-native; L on the lane axis)
    w_ref: (C, C)       conv weight (C_out, C_in); conv == w @ x_tile
    p_ref: (C, 4)       packed per-channel params: [scale, shift, scale*b+shift, 2*b]
    o_ref: (NB, C, TL)  output tile
    """
    w = w_ref[...]                                 # native dtype (f32 / bf16) -> MXU
    p = p_ref[...].astype(jnp.float32)
    scale = p[:, 0:1]                              # (C, 1) broadcast along lanes (L)
    shift = p[:, 1:2]
    c1 = p[:, 2:3]                                 # scale*bias + shift
    two_b = p[:, 3:4]                              # 2*bias

    nb = x_ref.shape[0]
    for b in range(nb):                            # static unroll, nb <= _MAX_NB
        xb = x_ref[b]                              # (C, TL), native dtype
        xf = xb.astype(jnp.float32)
        # fn = conv(x) without bias  (MXU, f32 accumulation)
        fn = jnp.dot(w, xb, preferred_element_type=jnp.float32)
        # h = relu(bn(conv(x) + x)); dropout is identity in eval mode
        h = jnp.maximum((fn + xf) * scale + c1, 0.0)
        # h2 = conv(h) without bias (feed the MXU in the I/O dtype)
        h2 = jnp.dot(w, h.astype(w.dtype), preferred_element_type=jnp.float32)
        # out = bn(relu(conv(h) + features)) = scale*relu(h2 + fn + 2b) + shift
        out = jnp.maximum(h2 + fn + two_b, 0.0) * scale + shift
        o_ref[b] = out.astype(o_ref.dtype)


def res_layer_forward(x_ncl, conv_w, conv_b, gamma, beta, run_mean, run_var,
                      *, io_dtype=None, target_block_bytes=2 << 20,
                      tile_l=None, batch_block=None):
    """x_ncl: (N, C, L).  conv_w: (C, C, 1) PyTorch Conv1d weight."""
    n, c, l = x_ncl.shape
    io_dtype = jnp.dtype(x_ncl.dtype if io_dtype is None else io_dtype)
    itemsize = io_dtype.itemsize
    f32 = jnp.float32

    x_in = x_ncl.astype(io_dtype)
    w = conv_w[:, :, 0].astype(io_dtype)                    # (C_out, C_in); y = w @ x

    # Fold eval-mode BatchNorm + conv bias into per-channel constants.
    scale = gamma.astype(f32) * jax.lax.rsqrt(run_var.astype(f32) + BN_EPS)
    shift = beta.astype(f32) - run_mean.astype(f32) * scale
    c1 = scale * conv_b.astype(f32) + shift
    two_b = 2.0 * conv_b.astype(f32)
    params = jnp.stack([scale, shift, c1, two_b], axis=1)   # (C, 4) f32

    # ---- block selection --------------------------------------------------
    # Target ~target_block_bytes of x per grid step so the ~0.35us fixed
    # per-step overhead is amortised; 2*(in+out) pipeline buffers + f32
    # temporaries stay well under the 32 MiB vmem limit set below.
    target_cols = max(128, target_block_bytes // max(1, c * itemsize))
    if tile_l is None:
        if l > target_cols:
            tile_l = max(128, (target_cols // 128) * 128)   # lane-dense 128 multiple
        else:
            tile_l = l                                      # full L (allowed)
    tile_l = int(tile_l)
    if batch_block is None:
        if tile_l >= l:
            batch_block = max(1, min(n, _MAX_NB, target_cols // max(l, 1)))
        else:
            batch_block = 1
    nb = int(batch_block)

    # Ragged last blocks along N and/or L are handled by Pallas (OOB reads are
    # unspecified values that only ever feed writes masked at the boundary).
    grid = (pl.cdiv(n, nb), pl.cdiv(l, tile_l))

    x_spec = pl.BlockSpec((nb, c, tile_l), lambda i, j: (i, 0, j))
    w_spec = pl.BlockSpec((c, c), lambda i, j: (0, 0))
    p_spec = pl.BlockSpec((c, 4), lambda i, j: (0, 0))

    cost = pl.CostEstimate(
        flops=int(4 * n * c * c * l),                       # two (C,C)@(C,L) matmuls
        transcendentals=0,                                  # BN folded in wrapper
        bytes_accessed=int(2 * n * c * l * itemsize + c * c * itemsize + 16 * c),
    )

    return pl.pallas_call(
        _reslayer_kernel,
        out_shape=jax.ShapeDtypeStruct((n, c, l), io_dtype),
        grid_spec=pltpu.PrefetchScalarGridSpec(
            num_scalar_prefetch=0,
            grid=grid,
            in_specs=[x_spec, w_spec, p_spec],
            out_specs=x_spec,
        ),
        compiler_params=pltpu.CompilerParams(
            dimension_semantics=("parallel", "parallel"),
            vmem_limit_bytes=32 * 1024 * 1024,
        ),
        cost_estimate=cost,
    )(x_in, w, params)


def _reference(x_ncl, conv_w, conv_b, gamma, beta, run_mean, run_var):
    """Pure-JAX reference of the eval-mode PyTorch forward (NCL layout)."""
    w = conv_w[:, :, 0]

    def conv(v):
        return jnp.einsum('oc,ncl->nol', w, v) + conv_b[None, :, None]

    def bn(v):
        inv = jax.lax.rsqrt(run_var + BN_EPS)
        return ((gamma * inv)[None, :, None] * (v - run_mean[None, :, None])
                + beta[None, :, None])

    feats = conv(x_ncl)
    h = jax.nn.relu(bn(feats + x_ncl))
    h2 = conv(h)
    return bn(jax.nn.relu(h2 + feats))


if __name__ == "__main__":
    C = 32  # emb_dim (channels)

    key = jax.random.PRNGKey(0)
    kx, kw, kb, kg, kbeta, kmean, kvar, kx2, kx3 = jax.random.split(key, 9)

    conv_w = jax.random.normal(kw, (C, C, 1), dtype=jnp.float32) * 0.1
    conv_b = jax.random.normal(kb, (C,), dtype=jnp.float32) * 0.1
    gamma = 1.0 + 0.1 * jax.random.normal(kg, (C,), dtype=jnp.float32)
    beta = 0.1 * jax.random.normal(kbeta, (C,), dtype=jnp.float32)
    run_mean = 0.1 * jax.random.normal(kmean, (C,), dtype=jnp.float32)
    run_var = 1.0 + 0.1 * jax.random.uniform(kvar, (C,), dtype=jnp.float32)
    bn_params = (conv_w, conv_b, gamma, beta, run_mean, run_var)

    # Case 1: tiny L -> single block, batch-blocked (nb=2), lane dim == full L.
    N, L = 2, 16
    x = jax.random.normal(kx, (N, C, L), dtype=jnp.float32)
    out = jax.block_until_ready(res_layer_forward(x, *bn_params))
    ref = _reference(x, *bn_params)
    assert out.shape == (N, C, L)
    assert jnp.allclose(out, ref, atol=1e-4, rtol=1e-4), "mismatch (case 1)"

    # Case 2: ragged multi-tile grid, no wrapper pad/slice: grid = (2, 2) with
    # partial last blocks along both N and L (masked by Pallas).
    N2, L2 = 3, 160
    x2 = jax.random.normal(kx2, (N2, C, L2), dtype=jnp.float32)
    out2 = jax.block_until_ready(
        res_layer_forward(x2, *bn_params, tile_l=128, batch_block=2))
    ref2 = _reference(x2, *bn_params)
    assert out2.shape == (N2, C, L2)
    assert jnp.allclose(out2, ref2, atol=1e-4, rtol=1e-4), "mismatch (case 2)"

    # Case 3: bf16 I/O path (halved HBM traffic; f32 accumulation in-kernel).
    N3, L3 = 2, 256
    x3 = jax.random.normal(kx3, (N3, C, L3), dtype=jnp.float32)
    out3 = jax.block_until_ready(
        res_layer_forward(x3, *bn_params, io_dtype=jnp.bfloat16))
    ref3 = _reference(x3.astype(jnp.bfloat16).astype(jnp.float32),
                      conv_w.astype(jnp.bfloat16).astype(jnp.float32),
                      conv_b, gamma, beta, run_mean, run_var)
    assert out3.shape == (N3, C, L3)
    assert jnp.allclose(out3.astype(jnp.float32), ref3, atol=5e-2, rtol=5e-2), \
        "mismatch (case 3)"

    print("KERNEL_OK")
</pallas_src>

<mosaic_0001>
module attributes {stable_mosaic.version = 11 : i64} {
  func.func @_reslayer_kernel(%arg0: i32, %arg1: i32, %arg2: memref<2x32x16xf32, #tpu.memory_space<vmem>>, %arg3: memref<32x32xf32, #tpu.memory_space<vmem>>, %arg4: memref<32x4xf32, #tpu.memory_space<vmem>>, %arg5: memref<2x32x16xf32, #tpu.memory_space<vmem>>) attributes {dimension_semantics = [#tpu.dimension_semantics<parallel>, #tpu.dimension_semantics<parallel>], iteration_bounds = array<i64: 1, 1>, scalar_prefetch = 0 : i64, scratch_operands = 0 : i64, tpu.core_type = #tpu.core_type<tc>, window_params = [{transform_indices = @transform_0, window_bounds = array<i64: 2, 32, 16>}, {pipeline_mode = #tpu.pipeline_mode<synchronous>, transform_indices = @transform_1, window_bounds = array<i64: 32, 32>}, {pipeline_mode = #tpu.pipeline_mode<synchronous>, transform_indices = @transform_2, window_bounds = array<i64: 32, 4>}, {transform_indices = @transform_3, window_bounds = array<i64: 2, 32, 16>}]} {
    %c0 = arith.constant 0 : index
    %c0_0 = arith.constant 0 : index
    %0 = vector.load %arg3[%c0, %c0_0] : memref<32x32xf32, #tpu.memory_space<vmem>>, vector<32x32xf32>
    %c0_1 = arith.constant 0 : index
    %c0_2 = arith.constant 0 : index
    %1 = vector.load %arg4[%c0_1, %c0_2] : memref<32x4xf32, #tpu.memory_space<vmem>>, vector<32x4xf32>
    %2 = vector.extract_strided_slice %1 {offsets = [0, 0], sizes = [32, 1], strides = [1, 1]} : vector<32x4xf32> to vector<32x1xf32>
    %3 = vector.extract_strided_slice %1 {offsets = [0, 1], sizes = [32, 1], strides = [1, 1]} : vector<32x4xf32> to vector<32x1xf32>
    %4 = vector.extract_strided_slice %1 {offsets = [0, 2], sizes = [32, 1], strides = [1, 1]} : vector<32x4xf32> to vector<32x1xf32>
    %5 = vector.extract_strided_slice %1 {offsets = [0, 3], sizes = [32, 1], strides = [1, 1]} : vector<32x4xf32> to vector<32x1xf32>
    %c0_3 = arith.constant 0 : index
    %c0_4 = arith.constant 0 : index
    %c0_5 = arith.constant 0 : index
    %6 = vector.load %arg2[%c0_3, %c0_4, %c0_5] : memref<2x32x16xf32, #tpu.memory_space<vmem>>, vector<1x32x16xf32>
    %7 = vector.shape_cast %6 : vector<1x32x16xf32> to vector<32x16xf32>
    %cst = arith.constant dense<0.000000e+00> : vector<32x16xf32>
    %8 = tpu.matmul %0, %7, %cst {dimension_numbers = #tpu.dot_dimension_numbers<[1], [0], [0], [1], [0, 0, 1, 1], [], []>} : vector<32x32xf32>, vector<32x16xf32>, vector<32x16xf32> -> vector<32x16xf32>
    %9 = arith.addf %8, %7 : vector<32x16xf32>
    %10 = vector.broadcast %2 : vector<32x1xf32> to vector<32x16xf32>
    %11 = arith.mulf %9, %10 : vector<32x16xf32>
    %12 = vector.broadcast %4 : vector<32x1xf32> to vector<32x16xf32>
    %13 = arith.addf %11, %12 : vector<32x16xf32>
    %cst_6 = arith.constant 0.000000e+00 : f32
    %14 = vector.broadcast %cst_6 : f32 to vector<32x16xf32>
    %15 = arith.maximumf %13, %14 : vector<32x16xf32>
    %cst_7 = arith.constant dense<0.000000e+00> : vector<32x16xf32>
    %16 = tpu.matmul %0, %15, %cst_7 {dimension_numbers = #tpu.dot_dimension_numbers<[1], [0], [0], [1], [0, 0, 1, 1], [], []>} : vector<32x32xf32>, vector<32x16xf32>, vector<32x16xf32> -> vector<32x16xf32>
    %17 = arith.addf %16, %8 : vector<32x16xf32>
    %18 = vector.broadcast %5 : vector<32x1xf32> to vector<32x16xf32>
    %19 = arith.addf %17, %18 : vector<32x16xf32>
    %cst_8 = arith.constant 0.000000e+00 : f32
    %20 = vector.broadcast %cst_8 : f32 to vector<32x16xf32>
    %21 = arith.maximumf %19, %20 : vector<32x16xf32>
    %22 = vector.broadcast %2 : vector<32x1xf32> to vector<32x16xf32>
    %23 = arith.mulf %21, %22 : vector<32x16xf32>
    %24 = vector.broadcast %3 : vector<32x1xf32> to vector<32x16xf32>
    %25 = arith.addf %23, %24 : vector<32x16xf32>
    %c0_9 = arith.constant 0 : index
    %c0_10 = arith.constant 0 : index
    %c0_11 = arith.constant 0 : index
    %26 = vector.load %arg5[%c0_9, %c0_10, %c0_11] : memref<2x32x16xf32, #tpu.memory_space<vmem>>, vector<1x32x16xf32>
    %27 = vector.shape_cast %26 : vector<1x32x16xf32> to vector<32x16xf32>
    %28 = vector.shape_cast %25 : vector<32x16xf32> to vector<1x32x16xf32>
    tpu.vector_store %arg5[%c0_9, %c0_10, %c0_11], %28 {strides = array<i32>} : memref<2x32x16xf32, #tpu.memory_space<vmem>>, vector<1x32x16xf32>,
    %c1 = arith.constant 1 : index
    %c0_12 = arith.constant 0 : index
    %c0_13 = arith.constant 0 : index
    %29 = vector.load %arg2[%c1, %c0_12, %c0_13] : memref<2x32x16xf32, #tpu.memory_space<vmem>>, vector<1x32x16xf32>
    %30 = vector.shape_cast %29 : vector<1x32x16xf32> to vector<32x16xf32>
    %cst_14 = arith.constant dense<0.000000e+00> : vector<32x16xf32>
    %31 = tpu.matmul %0, %30, %cst_14 {dimension_numbers = #tpu.dot_dimension_numbers<[1], [0], [0], [1], [0, 0, 1, 1], [], []>} : vector<32x32xf32>, vector<32x16xf32>, vector<32x16xf32> -> vector<32x16xf32>
    %32 = arith.addf %31, %30 : vector<32x16xf32>
    %33 = vector.broadcast %2 : vector<32x1xf32> to vector<32x16xf32>
    %34 = arith.mulf %32, %33 : vector<32x16xf32>
    %35 = vector.broadcast %4 : vector<32x1xf32> to vector<32x16xf32>
    %36 = arith.addf %34, %35 : vector<32x16xf32>
    %cst_15 = arith.constant 0.000000e+00 : f32
    %37 = vector.broadcast %cst_15 : f32 to vector<32x16xf32>
    %38 = arith.maximumf %36, %37 : vector<32x16xf32>
    %cst_16 = arith.constant dense<0.000000e+00> : vector<32x16xf32>
    %39 = tpu.matmul %0, %38, %cst_16 {dimension_numbers = #tpu.dot_dimension_numbers<[1], [0], [0], [1], [0, 0, 1, 1], [], []>} : vector<32x32xf32>, vector<32x16xf32>, vector<32x16xf32> -> vector<32x16xf32>
    %40 = arith.addf %39, %31 : vector<32x16xf32>
    %41 = vector.broadcast %5 : vector<32x1xf32> to vector<32x16xf32>
    %42 = arith.addf %40, %41 : vector<32x16xf32>
    %cst_17 = arith.constant 0.000000e+00 : f32
    %43 = vector.broadcast %cst_17 : f32 to vector<32x16xf32>
    %44 = arith.maximumf %42, %43 : vector<32x16xf32>
    %45 = vector.broadcast %2 : vector<32x1xf32> to vector<32x16xf32>
    %46 = arith.mulf %44, %45 : vector<32x16xf32>
    %47 = vector.broadcast %3 : vector<32x1xf32> to vector<32x16xf32>
    %48 = arith.addf %46, %47 : vector<32x16xf32>
    %c1_18 = arith.constant 1 : index
    %c0_19 = arith.constant 0 : index
    %c0_20 = arith.constant 0 : index
    %49 = vector.load %arg5[%c1_18, %c0_19, %c0_20] : memref<2x32x16xf32, #tpu.memory_space<vmem>>, vector<1x32x16xf32>
    %50 = vector.shape_cast %49 : vector<1x32x16xf32> to vector<32x16xf32>
    %51 = vector.shape_cast %48 : vector<32x16xf32> to vector<1x32x16xf32>
    tpu.vector_store %arg5[%c1_18, %c0_19, %c0_20], %51 {strides = array<i32>} : memref<2x32x16xf32, #tpu.memory_space<vmem>>, vector<1x32x16xf32>,
    return
  }
  func.func @transform_0(%arg0: i32, %arg1: i32) -> (i32, i32, i32) {
    %c0_i32 = arith.constant 0 : i32
    %c0_i32_0 = arith.constant 0 : i32
    return %arg0, %c0_i32, %arg1 : i32, i32, i32
  }
  func.func @transform_1(%arg0: i32, %arg1: i32) -> (i32, i32) {
    %c0_i32 = arith.constant 0 : i32
    %c0_i32_0 = arith.constant 0 : i32
    %c0_i32_1 = arith.constant 0 : i32
    return %c0_i32, %c0_i32_0 : i32, i32
  }
  func.func @transform_2(%arg0: i32, %arg1: i32) -> (i32, i32) {
    %c0_i32 = arith.constant 0 : i32
    %c0_i32_0 = arith.constant 0 : i32
    %c0_i32_1 = arith.constant 0 : i32
    return %c0_i32, %c0_i32_0 : i32, i32
  }
  func.func @transform_3(%arg0: i32, %arg1: i32) -> (i32, i32, i32) {
    %c0_i32 = arith.constant 0 : i32
    %c0_i32_0 = arith.constant 0 : i32
    return %arg0, %c0_i32, %arg1 : i32, i32, i32
  }
}

</mosaic_0001>

<llo_original>
// kernel: tpu_custom_call.1
$region0: #{tpu_custom_call.1}
  #allocation0 [shape = 'u32[]', space=smem, size = 0x4, offset = 0x4, fixed_abs, tag = 'smem constant byte address 0x4 - core index']
  #allocation1 [shape = 'u32[144,128]{1,0:T(1,128)}', space=vmem, size = 0x12000, scoped, tag = 'internal scratch']
  %s0 = inlined_call_operand.vmem [shape: f32[2,32,16], index: 0, kind: input, shape index: {}]
  %s1 = inlined_call_operand.vmem [shape: f32[32,32], index: 1, kind: input, shape index: {}]
  %s2 = inlined_call_operand.vmem [shape: f32[32,4], index: 2, kind: input, shape index: {}]
  %s3 = inlined_call_operand.vmem [shape: f32[2,32,16], index: 3, kind: output, shape index: {}]
  %s4 = sld [smem:[#allocation0]]
  $region22: #{tpu_custom_call.1} parent=0
    _
  %s6 = ssub.s32 1, %s4
  %s7 = scalar_select 0, %s6, %s4
  // Predicated region
  $region2: #{tpu_custom_call.1} parent=0 // pred_check
    _
  $region3: #{tpu_custom_call.1} parent=0 // pred_check_branch
    %9 = sbr.rel (0) target = $region5
  $region4: #{tpu_custom_call.1} parent=0 // pred_region
    _
  $region5: #{tpu_custom_call.1} parent=0 // pred_fallthru
    _
  // Predicated region
  $region6: #{tpu_custom_call.1} parent=0 // pred_check
    _
  $region7: #{tpu_custom_call.1} parent=0 // pred_check_branch
    %11 = sbr.rel (0) target = $region9
  $region8: #{tpu_custom_call.1} parent=0 // pred_region
    _
  $region9: #{tpu_custom_call.1} parent=0 // pred_fallthru
    _
  // Predicated region
  $region10: #{tpu_custom_call.1} parent=0 // pred_check
    _
  $region11: #{tpu_custom_call.1} parent=0 // pred_check_branch
    %13 = sbr.rel (0) target = $region13
  $region12: #{tpu_custom_call.1} parent=0 // pred_region
    _
  $region13: #{tpu_custom_call.1} parent=0 // pred_fallthru
    _
  %v14 = vld [vmem:[%s1] sm:$0xff]
  %v15 = vld [vmem:[%s1 + $0x8] sm:$0xff]
  %v16 = vld [vmem:[%s1 + $0x10] sm:$0xff]
  %v17 = vld [vmem:[%s1 + $0x18] sm:$0xff]
  %v18 = vld [vmem:[%s2] sm:$0xff]
  %v19 = vld [vmem:[%s2 + $0x8] sm:$0xff]
  %v20 = vld [vmem:[%s2 + $0x10] sm:$0xff]
  %v21 = vld [vmem:[%s2 + $0x18] sm:$0xff]
  %v22 = vld [vmem:[%s0] sm:$0xff]
  %v23 = vld [vmem:[%s0 + $0x8] sm:$0xff]
  %v24 = vld [vmem:[%s0 + $0x10] sm:$0xff]
  %v25 = vld [vmem:[%s0 + $0x18] sm:$0xff]
  %vm26 = vcmask 261120
  %v28 = vsel %vm26, %v14, 0
  %v31 = vsel %vm26, %v15, 0
  %v34 = vsel %vm26, %v16, 0
  %v37 = vsel %vm26, %v17, 0
  %39 = vmatprep.subr.mxu0 0.0
  %40 = vmatpush1.msra.mxu0 0.0
  %41 = vmatprep.subr.mxu0 0.0
  %42 = vmatpush1.msra.mxu0 0.0
  %43 = vmatprep.subr.mxu0 0.0
  %44 = vmatpush1.msra.mxu0 0.0
  %45 = vmatprep.subr.mxu0 0.0
  %46 = vmatpush1.msra.mxu0 0.0
  %47 = vmatprep.subr.mxu0 0.0
  %48 = vmatpush1.msra.mxu0 0.0
  %49 = vmatprep.subr.mxu0 0.0
  %50 = vmatpush1.msra.mxu0 0.0
  %51 = vmatprep.subr.mxu0 0.0
  %52 = vmatpush1.msra.mxu0 0.0
  %53 = vmatprep.subr.mxu0 0.0
  %54 = vmatpush1.msra.mxu0 0.0
  %55 = vmatprep.subr.mxu0 0.0
  %56 = vmatpush1.msra.mxu0 0.0
  %57 = vmatprep.subr.mxu0 0.0
  %58 = vmatpush1.msra.mxu0 0.0
  %59 = vmatprep.subr.mxu0 0.0
  %60 = vmatpush1.msra.mxu0 0.0
  %61 = vmatprep.subr.mxu0 0.0
  %62 = vmatpush1.msra.mxu0 0.0
  %63 = vmatprep.subr.mxu0 0.0
  %64 = vmatpush1.msra.mxu0 %v25
  %65 = vmatprep.subr.mxu0 0.0
  %66 = vmatpush1.msra.mxu0 %v24
  %67 = vmatprep.subr.mxu0 0.0
  %68 = vmatpush1.msra.mxu0 %v23
  %69 = vmatprep.subr.mxu0 0.0
  %70 = vmatpush1.msra.mxu0 %v22
  %71 = vmatprep.subr.mxu0 0.0
  %72 = vmatpush2.msra.mxu0 0.0
  %73 = vmatprep.subr.mxu0 0.0
  %74 = vmatpush2.msra.mxu0 0.0
  %75 = vmatprep.subr.mxu0 0.0
  %76 = vmatpush2.msra.mxu0 0.0
  %77 = vmatprep.subr.mxu0 0.0
  %78 = vmatpush2.msra.mxu0 0.0
  %79 = vmatprep.subr.mxu0 0.0
  %80 = vmatpush2.msra.mxu0 0.0
  %81 = vmatprep.subr.mxu0 0.0
  %82 = vmatpush2.msra.mxu0 0.0
  %83 = vmatprep.subr.mxu0 0.0
  %84 = vmatpush2.msra.mxu0 0.0
  %85 = vmatprep.subr.mxu0 0.0
  %86 = vmatpush2.msra.mxu0 0.0
  %87 = vmatprep.subr.mxu0 0.0
  %88 = vmatpush2.msra.mxu0 0.0
  %89 = vmatprep.subr.mxu0 0.0
  %90 = vmatpush2.msra.mxu0 0.0
  %91 = vmatprep.subr.mxu0 0.0
  %92 = vmatpush2.msra.mxu0 0.0
  %93 = vmatprep.subr.mxu0 0.0
  %94 = vmatpush2.msra.mxu0 0.0
  %95 = vmatprep.subr.mxu0 0.0
  %96 = vmatpush2.msra.mxu0 0.0
  %97 = vmatprep.subr.mxu0 0.0
  %98 = vmatpush2.msra.mxu0 0.0
  %99 = vmatprep.subr.mxu0 0.0
  %100 = vmatpush2.msra.mxu0 0.0
  %101 = vmatprep.subr.mxu0 0.0
  %102 = vmatpush2.msra.mxu0 0.0
  %103 = vmatprep.mubr.f32.mxu0 0.0
  %104 = vmatmul.mubr.f32.gmra.mxu0 %v28
  %v105 = vpop.f32.mrf.mxu0
  %v106 = vadd.f32 0.0, %v105
  %v107 = vpop.f32.mrf.mxu0
  %108 = vmatprep.mubr.f32.mxu0 0.0
  %109 = vmatmul.mubr.f32.gmra.mxu0 %v31
  %v110 = vpop.f32.mrf.mxu0
  %v111 = vadd.f32 0.0, %v110
  %v112 = vpop.f32.mrf.mxu0
  %113 = vmatprep.mubr.f32.mxu0 0.0
  %114 = vmatmul.mubr.f32.gmra.mxu0 %v34
  %v115 = vpop.f32.mrf.mxu0
  %v116 = vadd.f32 0.0, %v115
  %v117 = vpop.f32.mrf.mxu0
  %118 = vmatprep.mubr.f32.mxu0 0.0
  %119 = vmatmul.mubr.f32.gmra.mxu0 %v37
  %v120 = vpop.f32.mrf.mxu0
  %v121 = vadd.f32 0.0, %v120
  %v122 = vpop.f32.mrf.mxu0
  %123 = vdwg.mxu0
  %v124 = vadd.f32 %v106, %v22
  %v125 = vadd.f32 %v111, %v23
  %v126 = vadd.f32 %v116, %v24
  %v127 = vadd.f32 %v121, %v25
  %129 = vset.pattern.permute.xlu0 0
  %130 = vperm.xlu0 %129, %v18
  %v131 = vpop.permute.xlu0 %130
  %134 = vset.pattern.permute.xlu0 0
  %135 = vperm.xlu0 %134, %v19
  %v136 = vpop.permute.xlu0 %135
  %139 = vset.pattern.permute.xlu0 0
  %140 = vperm.xlu0 %139, %v20
  %v141 = vpop.permute.xlu0 %140
  %144 = vset.pattern.permute.xlu0 0
  %145 = vperm.xlu0 %144, %v21
  %v146 = vpop.permute.xlu0 %145
  %v148 = vmul.f32 %v124, %v131
  %v149 = vmul.f32 %v125, %v136
  %v150 = vmul.f32 %v126, %v141
  %v151 = vmul.f32 %v127, %v146
  %152 = vset.pattern.permute.xlu0 2
  %153 = vperm.xlu0 %152, %v18
  %v154 = vpop.permute.xlu0 %153
  %156 = vset.pattern.permute.xlu0 2
  %157 = vperm.xlu0 %156, %v19
  %v158 = vpop.permute.xlu0 %157
  %160 = vset.pattern.permute.xlu0 2
  %161 = vperm.xlu0 %160, %v20
  %v162 = vpop.permute.xlu0 %161
  %164 = vset.pattern.permute.xlu0 2
  %165 = vperm.xlu0 %164, %v21
  %v166 = vpop.permute.xlu0 %165
  %v168 = vadd.f32 %v148, %v154
  %v169 = vadd.f32 %v149, %v158
  %v170 = vadd.f32 %v150, %v162
  %v171 = vadd.f32 %v151, %v166
  %v172 = vmax.f32 %v168, 0.0
  %v173 = vmax.f32 %v169, 0.0
  %v174 = vmax.f32 %v170, 0.0
  %v175 = vmax.f32 %v171, 0.0
  %176 = vmatprep.subr.mxu0 0.0
  %177 = vmatpush1.msra.mxu0 0.0
  %178 = vmatprep.subr.mxu0 0.0
  %179 = vmatpush1.msra.mxu0 0.0
  %180 = vmatprep.subr.mxu0 0.0
  %181 = vmatpush1.msra.mxu0 0.0
  %182 = vmatprep.subr.mxu0 0.0
  %183 = vmatpush1.msra.mxu0 0.0
  %184 = vmatprep.subr.mxu0 0.0
  %185 = vmatpush1.msra.mxu0 0.0
  %186 = vmatprep.subr.mxu0 0.0
  %187 = vmatpush1.msra.mxu0 0.0
  %188 = vmatprep.subr.mxu0 0.0
  %189 = vmatpush1.msra.mxu0 0.0
  %190 = vmatprep.subr.mxu0 0.0
  %191 = vmatpush1.msra.mxu0 0.0
  %192 = vmatprep.subr.mxu0 0.0
  %193 = vmatpush1.msra.mxu0 0.0
  %194 = vmatprep.subr.mxu0 0.0
  %195 = vmatpush1.msra.mxu0 0.0
  %196 = vmatprep.subr.mxu0 0.0
  %197 = vmatpush1.msra.mxu0 0.0
  %198 = vmatprep.subr.mxu0 0.0
  %199 = vmatpush1.msra.mxu0 0.0
  %200 = vmatprep.subr.mxu0 0.0
  %201 = vmatpush1.msra.mxu0 %v175
  %202 = vmatprep.subr.mxu0 0.0
  %203 = vmatpush1.msra.mxu0 %v174
  %204 = vmatprep.subr.mxu0 0.0
  %205 = vmatpush1.msra.mxu0 %v173
  %206 = vmatprep.subr.mxu0 0.0
  %207 = vmatpush1.msra.mxu0 %v172
  %208 = vmatprep.subr.mxu0 0.0
  %209 = vmatpush2.msra.mxu0 0.0
  %210 = vmatprep.subr.mxu0 0.0
  %211 = vmatpush2.msra.mxu0 0.0
  %212 = vmatprep.subr.mxu0 0.0
  %213 = vmatpush2.msra.mxu0 0.0
  %214 = vmatprep.subr.mxu0 0.0
  %215 = vmatpush2.msra.mxu0 0.0
  %216 = vmatprep.subr.mxu0 0.0
  %217 = vmatpush2.msra.mxu0 0.0
  %218 = vmatprep.subr.mxu0 0.0
  %219 = vmatpush2.msra.mxu0 0.0
  %220 = vmatprep.subr.mxu0 0.0
  %221 = vmatpush2.msra.mxu0 0.0
  %222 = vmatprep.subr.mxu0 0.0
  %223 = vmatpush2.msra.mxu0 0.0
  %224 = vmatprep.subr.mxu0 0.0
  %225 = vmatpush2.msra.mxu0 0.0
  %226 = vmatprep.subr.mxu0 0.0
  %227 = vmatpush2.msra.mxu0 0.0
  %228 = vmatprep.subr.mxu0 0.0
  %229 = vmatpush2.msra.mxu0 0.0
  %230 = vmatprep.subr.mxu0 0.0
  %231 = vmatpush2.msra.mxu0 0.0
  %232 = vmatprep.subr.mxu0 0.0
  %233 = vmatpush2.msra.mxu0 0.0
  %234 = vmatprep.subr.mxu0 0.0
  %235 = vmatpush2.msra.mxu0 0.0
  %236 = vmatprep.subr.mxu0 0.0
  %237 = vmatpush2.msra.mxu0 0.0
  %238 = vmatprep.subr.mxu0 0.0
  %239 = vmatpush2.msra.mxu0 0.0
  %240 = vmatprep.mubr.f32.mxu0 0.0
  %241 = vmatmul.mubr.f32.gmra.mxu0 %v28
  %v242 = vpop.f32.mrf.mxu0
  %v243 = vadd.f32 %v106, %v242
  %v244 = vpop.f32.mrf.mxu0
  %245 = vmatprep.mubr.f32.mxu0 0.0
  %246 = vmatmul.mubr.f32.gmra.mxu0 %v31
  %v247 = vpop.f32.mrf.mxu0
  %v248 = vadd.f32 %v111, %v247
  %v249 = vpop.f32.mrf.mxu0
  %250 = vmatprep.mubr.f32.mxu0 0.0
  %251 = vmatmul.mubr.f32.gmra.mxu0 %v34
  %v252 = vpop.f32.mrf.mxu0
  %v253 = vadd.f32 %v116, %v252
  %v254 = vpop.f32.mrf.mxu0
  %255 = vmatprep.mubr.f32.mxu0 0.0
  %256 = vmatmul.mubr.f32.gmra.mxu0 %v37
  %v257 = vpop.f32.mrf.mxu0
  %v258 = vadd.f32 %v121, %v257
  %v259 = vpop.f32.mrf.mxu0
  %260 = vdwg.mxu0
  %261 = vset.pattern.permute.xlu0 3
  %262 = vperm.xlu0 %261, %v18
  %v263 = vpop.permute.xlu0 %262
  %265 = vset.pattern.permute.xlu0 3
  %266 = vperm.xlu0 %265, %v19
  %v267 = vpop.permute.xlu0 %266
  %269 = vset.pattern.permute.xlu0 3
  %270 = vperm.xlu0 %269, %v20
  %v271 = vpop.permute.xlu0 %270
  %273 = vset.pattern.permute.xlu0 3
  %274 = vperm.xlu0 %273, %v21
  %v275 = vpop.permute.xlu0 %274
  %v277 = vadd.f32 %v243, %v263
  %v278 = vadd.f32 %v248, %v267
  %v279 = vadd.f32 %v253, %v271
  %v280 = vadd.f32 %v258, %v275
  %v281 = vmax.f32 %v277, 0.0
  %v282 = vmax.f32 %v278, 0.0
  %v283 = vmax.f32 %v279, 0.0
  %v284 = vmax.f32 %v280, 0.0
  %v285 = vmul.f32 %v281, %v131
  %v286 = vmul.f32 %v282, %v136
  %v287 = vmul.f32 %v283, %v141
  %v288 = vmul.f32 %v284, %v146
  %289 = vset.pattern.permute.xlu0 1
  %290 = vperm.xlu0 %289, %v18
  %v291 = vpop.permute.xlu0 %290
  %293 = vset.pattern.permute.xlu0 1
  %294 = vperm.xlu0 %293, %v19
  %v295 = vpop.permute.xlu0 %294
  %297 = vset.pattern.permute.xlu0 1
  %298 = vperm.xlu0 %297, %v20
  %v299 = vpop.permute.xlu0 %298
  %301 = vset.pattern.permute.xlu0 1
  %302 = vperm.xlu0 %301, %v21
  %v303 = vpop.permute.xlu0 %302
  %v305 = vadd.f32 %v285, %v291
  %v306 = vadd.f32 %v286, %v295
  %v307 = vadd.f32 %v287, %v299
  %v308 = vadd.f32 %v288, %v303
  %vm309 = vcmask 130048
  %310 = vst.msk [vmem:[%s3] sm:$0xff] %vm309, %v305
  %311 = vst.msk [vmem:[%s3 + $0x8] sm:$0xff] %vm309, %v306
  %312 = vst.msk [vmem:[%s3 + $0x10] sm:$0xff] %vm309, %v307
  %313 = vst.msk [vmem:[%s3 + $0x18] sm:$0xff] %vm309, %v308
  %s314 = scalar_lea.vmem %s0, 32
  %v315 = vld [vmem:[%s314] sm:$0xff]
  %v316 = vld [vmem:[%s314 + $0x8] sm:$0xff]
  %v317 = vld [vmem:[%s314 + $0x10] sm:$0xff]
  %v318 = vld [vmem:[%s314 + $0x18] sm:$0xff]
  %319 = vmatprep.subr.mxu0 0.0
  %320 = vmatpush1.msra.mxu0 0.0
  %321 = vmatprep.subr.mxu0 0.0
  %322 = vmatpush1.msra.mxu0 0.0
  %323 = vmatprep.subr.mxu0 0.0
  %324 = vmatpush1.msra.mxu0 0.0
  %325 = vmatprep.subr.mxu0 0.0
  %326 = vmatpush1.msra.mxu0 0.0
  %327 = vmatprep.subr.mxu0 0.0
  %328 = vmatpush1.msra.mxu0 0.0
  %329 = vmatprep.subr.mxu0 0.0
  %330 = vmatpush1.msra.mxu0 0.0
  %331 = vmatprep.subr.mxu0 0.0
  %332 = vmatpush1.msra.mxu0 0.0
  %333 = vmatprep.subr.mxu0 0.0
  %334 = vmatpush1.msra.mxu0 0.0
  %335 = vmatprep.subr.mxu0 0.0
  %336 = vmatpush1.msra.mxu0 0.0
  %337 = vmatprep.subr.mxu0 0.0
  %338 = vmatpush1.msra.mxu0 0.0
  %339 = vmatprep.subr.mxu0 0.0
  %340 = vmatpush1.msra.mxu0 0.0
  %341 = vmatprep.subr.mxu0 0.0
  %342 = vmatpush1.msra.mxu0 0.0
  %343 = vmatprep.subr.mxu0 0.0
  %344 = vmatpush1.msra.mxu0 %v318
  %345 = vmatprep.subr.mxu0 0.0
  %346 = vmatpush1.msra.mxu0 %v317
  %347 = vmatprep.subr.mxu0 0.0
  %348 = vmatpush1.msra.mxu0 %v316
  %349 = vmatprep.subr.mxu0 0.0
  %350 = vmatpush1.msra.mxu0 %v315
  %351 = vmatprep.subr.mxu0 0.0
  %352 = vmatpush2.msra.mxu0 0.0
  %353 = vmatprep.subr.mxu0 0.0
  %354 = vmatpush2.msra.mxu0 0.0
  %355 = vmatprep.subr.mxu0 0.0
  %356 = vmatpush2.msra.mxu0 0.0
  %357 = vmatprep.subr.mxu0 0.0
  %358 = vmatpush2.msra.mxu0 0.0
  %359 = vmatprep.subr.mxu0 0.0
  %360 = vmatpush2.msra.mxu0 0.0
  %361 = vmatprep.subr.mxu0 0.0
  %362 = vmatpush2.msra.mxu0 0.0
  %363 = vmatprep.subr.mxu0 0.0
  %364 = vmatpush2.msra.mxu0 0.0
  %365 = vmatprep.subr.mxu0 0.0
  %366 = vmatpush2.msra.mxu0 0.0
  %367 = vmatprep.subr.mxu0 0.0
  %368 = vmatpush2.msra.mxu0 0.0
  %369 = vmatprep.subr.mxu0 0.0
  %370 = vmatpush2.msra.mxu0 0.0
  %371 = vmatprep.subr.mxu0 0.0
  %372 = vmatpush2.msra.mxu0 0.0
  %373 = vmatprep.subr.mxu0 0.0
  %374 = vmatpush2.msra.mxu0 0.0
  %375 = vmatprep.subr.mxu0 0.0
  %376 = vmatpush2.msra.mxu0 0.0
  %377 = vmatprep.subr.mxu0 0.0
  %378 = vmatpush2.msra.mxu0 0.0
  %379 = vmatprep.subr.mxu0 0.0
  %380 = vmatpush2.msra.mxu0 0.0
  %381 = vmatprep.subr.mxu0 0.0
  %382 = vmatpush2.msra.mxu0 0.0
  %383 = vmatprep.mubr.f32.mxu0 0.0
  %384 = vmatmul.mubr.f32.gmra.mxu0 %v28
  %v385 = vpop.f32.mrf.mxu0
  %v386 = vadd.f32 0.0, %v385
  %v387 = vpop.f32.mrf.mxu0
  %388 = vmatprep.mubr.f32.mxu0 0.0
  %389 = vmatmul.mubr.f32.gmra.mxu0 %v31
  %v390 = vpop.f32.mrf.mxu0
  %v391 = vadd.f32 0.0, %v390
  %v392 = vpop.f32.mrf.mxu0
  %393 = vmatprep.mubr.f32.mxu0 0.0
  %394 = vmatmul.mubr.f32.gmra.mxu0 %v34
  %v395 = vpop.f32.mrf.mxu0
  %v396 = vadd.f32 0.0, %v395
  %v397 = vpop.f32.mrf.mxu0
  %398 = vmatprep.mubr.f32.mxu0 0.0
  %399 = vmatmul.mubr.f32.gmra.mxu0 %v37
  %v400 = vpop.f32.mrf.mxu0
  %v401 = vadd.f32 0.0, %v400
  %v402 = vpop.f32.mrf.mxu0
  %403 = vdwg.mxu0
  %v404 = vadd.f32 %v386, %v315
  %v405 = vadd.f32 %v391, %v316
  %v406 = vadd.f32 %v396, %v317
  %v407 = vadd.f32 %v401, %v318
  %v408 = vmul.f32 %v404, %v131
  %v409 = vmul.f32 %v405, %v136
  %v410 = vmul.f32 %v406, %v141
  %v411 = vmul.f32 %v407, %v146
  %v412 = vadd.f32 %v408, %v154
  %v413 = vadd.f32 %v409, %v158
  %v414 = vadd.f32 %v410, %v162
  %v415 = vadd.f32 %v411, %v166
  %v416 = vmax.f32 %v412, 0.0
  %v417 = vmax.f32 %v413, 0.0
  %v418 = vmax.f32 %v414, 0.0
  %v419 = vmax.f32 %v415, 0.0
  %420 = vmatprep.subr.mxu0 0.0
  %421 = vmatpush1.msra.mxu0 0.0
  %422 = vmatprep.subr.mxu0 0.0
  %423 = vmatpush1.msra.mxu0 0.0
  %424 = vmatprep.subr.mxu0 0.0
  %425 = vmatpush1.msra.mxu0 0.0
  %426 = vmatprep.subr.mxu0 0.0
  %427 = vmatpush1.msra.mxu0 0.0
  %428 = vmatprep.subr.mxu0 0.0
  %429 = vmatpush1.msra.mxu0 0.0
  %430 = vmatprep.subr.mxu0 0.0
  %431 = vmatpush1.msra.mxu0 0.0
  %432 = vmatprep.subr.mxu0 0.0
  %433 = vmatpush1.msra.mxu0 0.0
  %434 = vmatprep.subr.mxu0 0.0
  %435 = vmatpush1.msra.mxu0 0.0
  %436 = vmatprep.subr.mxu0 0.0
  %437 = vmatpush1.msra.mxu0 0.0
  %438 = vmatprep.subr.mxu0 0.0
  %439 = vmatpush1.msra.mxu0 0.0
  %440 = vmatprep.subr.mxu0 0.0
  %441 = vmatpush1.msra.mxu0 0.0
  %442 = vmatprep.subr.mxu0 0.0
  %443 = vmatpush1.msra.mxu0 0.0
  %444 = vmatprep.subr.mxu0 0.0
  %445 = vmatpush1.msra.mxu0 %v419
  %446 = vmatprep.subr.mxu0 0.0
  %447 = vmatpush1.msra.mxu0 %v418
  %448 = vmatprep.subr.mxu0 0.0
  %449 = vmatpush1.msra.mxu0 %v417
  %450 = vmatprep.subr.mxu0 0.0
  %451 = vmatpush1.msra.mxu0 %v416
  %452 = vmatprep.subr.mxu0 0.0
  %453 = vmatpush2.msra.mxu0 0.0
  %454 = vmatprep.subr.mxu0 0.0
  %455 = vmatpush2.msra.mxu0 0.0
  %456 = vmatprep.subr.mxu0 0.0
  %457 = vmatpush2.msra.mxu0 0.0
  %458 = vmatprep.subr.mxu0 0.0
  %459 = vmatpush2.msra.mxu0 0.0
  %460 = vmatprep.subr.mxu0 0.0
  %461 = vmatpush2.msra.mxu0 0.0
  %462 = vmatprep.subr.mxu0 0.0
  %463 = vmatpush2.msra.mxu0 0.0
  %464 = vmatprep.subr.mxu0 0.0
  %465 = vmatpush2.msra.mxu0 0.0
  %466 = vmatprep.subr.mxu0 0.0
  %467 = vmatpush2.msra.mxu0 0.0
  %468 = vmatprep.subr.mxu0 0.0
  %469 = vmatpush2.msra.mxu0 0.0
  %470 = vmatprep.subr.mxu0 0.0
  %471 = vmatpush2.msra.mxu0 0.0
  %472 = vmatprep.subr.mxu0 0.0
  %473 = vmatpush2.msra.mxu0 0.0
  %474 = vmatprep.subr.mxu0 0.0
  %475 = vmatpush2.msra.mxu0 0.0
  %476 = vmatprep.subr.mxu0 0.0
  %477 = vmatpush2.msra.mxu0 0.0
  %478 = vmatprep.subr.mxu0 0.0
  %479 = vmatpush2.msra.mxu0 0.0
  %480 = vmatprep.subr.mxu0 0.0
  %481 = vmatpush2.msra.mxu0 0.0
  %482 = vmatprep.subr.mxu0 0.0
  %483 = vmatpush2.msra.mxu0 0.0
  %484 = vmatprep.mubr.f32.mxu0 0.0
  %485 = vmatmul.mubr.f32.gmra.mxu0 %v28
  %v486 = vpop.f32.mrf.mxu0
  %v487 = vadd.f32 %v386, %v486
  %v488 = vpop.f32.mrf.mxu0
  %489 = vmatprep.mubr.f32.mxu0 0.0
  %490 = vmatmul.mubr.f32.gmra.mxu0 %v31
  %v491 = vpop.f32.mrf.mxu0
  %v492 = vadd.f32 %v391, %v491
  %v493 = vpop.f32.mrf.mxu0
  %494 = vmatprep.mubr.f32.mxu0 0.0
  %495 = vmatmul.mubr.f32.gmra.mxu0 %v34
  %v496 = vpop.f32.mrf.mxu0
  %v497 = vadd.f32 %v396, %v496
  %v498 = vpop.f32.mrf.mxu0
  %499 = vmatprep.mubr.f32.mxu0 0.0
  %500 = vmatmul.mubr.f32.gmra.mxu0 %v37
  %v501 = vpop.f32.mrf.mxu0
  %v502 = vadd.f32 %v401, %v501
  %v503 = vpop.f32.mrf.mxu0
  %504 = vdwg.mxu0
  %v505 = vadd.f32 %v487, %v263
  %v506 = vadd.f32 %v492, %v267
  %v507 = vadd.f32 %v497, %v271
  %v508 = vadd.f32 %v502, %v275
  %v509 = vmax.f32 %v505, 0.0
  %v510 = vmax.f32 %v506, 0.0
  %v511 = vmax.f32 %v507, 0.0
  %v512 = vmax.f32 %v508, 0.0
  %v513 = vmul.f32 %v509, %v131
  %v514 = vmul.f32 %v510, %v136
  %v515 = vmul.f32 %v511, %v141
  %v516 = vmul.f32 %v512, %v146
  %v517 = vadd.f32 %v513, %v291
  %v518 = vadd.f32 %v514, %v295
  %v519 = vadd.f32 %v515, %v299
  %v520 = vadd.f32 %v516, %v303
  %s521 = scalar_lea.vmem %s3, 32
  %522 = vst.msk [vmem:[%s521] sm:$0xff] %vm309, %v517
  %523 = vst.msk [vmem:[%s521 + $0x8] sm:$0xff] %vm309, %v518
  %524 = vst.msk [vmem:[%s521 + $0x10] sm:$0xff] %vm309, %v519
  %525 = vst.msk [vmem:[%s521 + $0x18] sm:$0xff] %vm309, %v520
  // Predicated region
  $region14: #{tpu_custom_call.1} parent=0 // pred_check
    _
  $region15: #{tpu_custom_call.1} parent=0 // pred_check_branch
    %527 = sbr.rel (0) target = $region17
  $region16: #{tpu_custom_call.1} parent=0 // pred_region
    _
  $region17: #{tpu_custom_call.1} parent=0 // pred_fallthru
    _
  // Predicated region
  $region18: #{tpu_custom_call.1} parent=0 // pred_check
    _
  $region19: #{tpu_custom_call.1} parent=0 // pred_check_branch
    %529 = sbr.rel (0) target = $region21
  $region20: #{tpu_custom_call.1} parent=0 // pred_region
    _
  $region21: #{tpu_custom_call.1} parent=0 // pred_fallthru
    _

</llo_original>
